<compile_context>
chip_gen: v5e
topology: v5e:2x2
jax: 0.10.0
libtpu: 0.0.40
codegen_flags: <defaults>
</compile_context>

<pallas_src>
import functools

import jax
import jax.numpy as jnp
from jax.experimental import pallas as pl
from jax.experimental.pallas import tpu as pltpu

SUBLANE = 8  # f32 sublane tile height


def conv3x3_kernel(x_ref, w_ref, b_ref, o_ref, *, width, kh, kw):
    """Single-invocation 3x3 SAME conv.

    x_ref: (N, Cpad, HWp) f32 - per image/channel: [W+1 zeros][H*W pixels][W+1 zeros],
           channels zero-padded from Cin to Cpad (sublane-tile aligned).
    w_ref: (Cout, KH*KW*Cpad) bf16 - folded weights, tap-major / channel-minor.
    b_ref: (Cout, 1) f32 bias column.
    o_ref: (N, Cout, H*W) f32 lane-dense output.
    """
    n_img, cpad, hwp = x_ref.shape
    _, cout, hw = o_ref.shape

    # Column masks: only horizontal taps can pull pixels from the wrong row in the
    # flattened layout; vertical overflow always lands in the zero pad rows.
    col = jax.lax.broadcasted_iota(jnp.int32, (cpad, hw), 1) % width
    not_left = col != 0              # needed for kx == 0 taps
    not_right = col != width - 1     # needed for kx == kw-1 taps

    for n in range(n_img):                               # static unroll (N is small)
        xv = x_ref[n]                                    # (Cpad, HWp) f32, one load
        taps = []
        for ky in range(kh):
            for kx in range(kw):
                start = ky * width + kx                  # contiguous lane slice per tap
                sl = xv[:, start:start + hw]             # (Cpad, HW)
                if kx == 0:
                    sl = jnp.where(not_left, sl, 0.0)
                elif kx == kw - 1:
                    sl = jnp.where(not_right, sl, 0.0)
                taps.append(sl)
        # On-chip im2col slab, tap-major rows -> matches the folded weight layout.
        patches = jnp.concatenate(taps, axis=0)          # (kh*kw*Cpad, HW) f32
        acc = jnp.dot(w_ref[...], patches.astype(w_ref.dtype),   # bf16 x bf16 on MXU
                      preferred_element_type=jnp.float32)        # f32 accumulate
        o_ref[n] = (acc + b_ref[...]).astype(o_ref.dtype)        # f32 epilogue, 256-lane vst


def conv2d_3x3_same(x_nchw, w_oihw, bias):
    """Equivalent of nn.Conv2d(Cin, Cout, kernel_size=3, stride=1, padding=1)."""
    N, Cin, H, W = x_nchw.shape
    Cout, _, KH, KW = w_oihw.shape
    assert (KH, KW) == (3, 3)
    HW = H * W
    Cpad = max(SUBLANE, ((Cin + SUBLANE - 1) // SUBLANE) * SUBLANE)
    HWp = HW + 2 * (W + 1)

    # ---- cheap glue (plain JAX, no 9x im2col materialization in HBM) ----
    # Flatten spatial, then zero-pad: one top pad row, one bottom pad row, plus one
    # guard element on each side so every 3x3 tap becomes a contiguous lane slice.
    # Also pad channels Cin -> Cpad so each tap slab is one aligned sublane tile.
    xflat = x_nchw.reshape(N, Cin, HW)
    xpad = jnp.pad(xflat, ((0, 0), (0, Cpad - Cin), (W + 1, W + 1)))     # (N, Cpad, HWp)

    # Fold weights tap-major / channel-minor:
    #   wmat[o, (ky*KW + kx)*Cpad + ci] = w[o, ci, ky, kx]   (zero for ci >= Cin)
    wt = jnp.transpose(w_oihw, (0, 2, 3, 1))                              # (Cout, KH, KW, Cin)
    wt = jnp.pad(wt, ((0, 0), (0, 0), (0, 0), (0, Cpad - Cin)))
    wmat = wt.reshape(Cout, KH * KW * Cpad).astype(jnp.bfloat16)          # bf16 MXU operand
    bcol = bias.reshape(Cout, 1).astype(jnp.float32)

    # ---- hot path: single kernel invocation, one folded matmul per image ----
    # (For large N, block B >= 8 images per grid step with a "parallel" axis; at
    #  N=2 a single step is faster than splitting tiny work across TensorCores.)
    out = pl.pallas_call(
        functools.partial(conv3x3_kernel, width=W, kh=KH, kw=KW),
        out_shape=jax.ShapeDtypeStruct((N, Cout, HW), x_nchw.dtype),
        in_specs=[
            pl.BlockSpec(memory_space=pltpu.MemorySpace.VMEM),
            pl.BlockSpec(memory_space=pltpu.MemorySpace.VMEM),
            pl.BlockSpec(memory_space=pltpu.MemorySpace.VMEM),
        ],
        out_specs=pl.BlockSpec(memory_space=pltpu.MemorySpace.VMEM),
    )(xpad, wmat, bcol)

    return out.reshape(N, Cout, H, W)                    # already NCHW, no transpose


if __name__ == "__main__":
    key = jax.random.PRNGKey(0)
    kx, kw, kb = jax.random.split(key, 3)

    # Small shapes consistent with the module: batch=2, Cin=3, 16x16 spatial.
    N, Cin, H, W = 2, 3, 16, 16
    Cout, KH, KW = 32, 3, 3

    x = jax.random.normal(kx, (N, Cin, H, W), dtype=jnp.float32)
    fan_in = Cin * KH * KW
    w = jax.random.normal(kw, (Cout, Cin, KH, KW), dtype=jnp.float32) / jnp.sqrt(fan_in)
    b = jax.random.normal(kb, (Cout,), dtype=jnp.float32) * 0.1

    out = jax.jit(conv2d_3x3_same)(x, w, b)
    out = jax.block_until_ready(out)

    # Reference: exact f32 conv (same semantics as PyTorch conv2d with padding=1).
    ref = jax.lax.conv_general_dilated(
        x, w, window_strides=(1, 1), padding="SAME",
        dimension_numbers=("NCHW", "OIHW", "NCHW"),
        precision=jax.lax.Precision.HIGHEST,
    ) + b.reshape(1, Cout, 1, 1)

    assert out.shape == (N, Cout, H, W)
    # bf16 MXU operands (per perf review) -> relaxed tolerance vs exact-f32 reference.
    assert jnp.allclose(out, ref, atol=5e-2, rtol=5e-2), "mismatch vs reference conv"

    print("KERNEL_OK")
</pallas_src>

<mosaic_0001>
module attributes {stable_mosaic.version = 11 : i64} {
  func.func @conv3x3_kernel(%arg0: memref<2x8x290xf32, #tpu.memory_space<vmem>>, %arg1: memref<32x72xbf16, #tpu.memory_space<vmem>>, %arg2: memref<32x1xf32, #tpu.memory_space<vmem>>, %arg3: memref<2x32x256xf32, #tpu.memory_space<vmem>>) attributes {dimension_semantics = [], scalar_prefetch = 0 : i64, scratch_operands = 0 : i64, tpu.core_type = #tpu.core_type<tc>} {
    %0 = tpu.iota {dimensions = array<i32: 1>} : vector<8x256xi32>
    %c16_i32 = arith.constant 16 : i32
    %c0_i32 = arith.constant 0 : i32
    %1 = arith.cmpi eq, %c16_i32, %c0_i32 : i32
    %c1_i32 = arith.constant 1 : i32
    %2 = arith.select %1, %c1_i32, %c16_i32 : i32
    %3 = vector.broadcast %2 : i32 to vector<8x256xi32>
    %4 = arith.remsi %0, %3 : vector<8x256xi32>
    %c0_i32_0 = arith.constant 0 : i32
    %5 = vector.broadcast %c0_i32_0 : i32 to vector<8x256xi32>
    %6 = arith.cmpi ne, %4, %5 : vector<8x256xi32>
    %c0_i32_1 = arith.constant 0 : i32
    %7 = vector.broadcast %c0_i32_1 : i32 to vector<8x256xi32>
    %8 = arith.cmpi slt, %4, %7 : vector<8x256xi32>
    %c0_i32_2 = arith.constant 0 : i32
    %9 = arith.cmpi slt, %2, %c0_i32_2 : i32
    %10 = vector.broadcast %9 : i1 to vector<8x256xi1>
    %11 = vector.broadcast %10 : vector<8x256xi1> to vector<8x256xi1>
    %12 = arith.xori %8, %11 : vector<8x256xi1>
    %13 = arith.andi %12, %6 : vector<8x256xi1>
    %14 = vector.broadcast %2 : i32 to vector<8x256xi32>
    %15 = arith.addi %4, %14 : vector<8x256xi32>
    %16 = arith.select %13, %15, %4 : vector<8x256xi1>, vector<8x256xi32>
    %c0_i32_3 = arith.constant 0 : i32
    %17 = vector.broadcast %c0_i32_3 : i32 to vector<8x256xi32>
    %18 = arith.cmpi ne, %16, %17 : vector<8x256xi32>
    %c15_i32 = arith.constant 15 : i32
    %19 = vector.broadcast %c15_i32 : i32 to vector<8x256xi32>
    %20 = arith.cmpi ne, %16, %19 : vector<8x256xi32>
    %c0 = arith.constant 0 : index
    %c0_4 = arith.constant 0 : index
    %c0_5 = arith.constant 0 : index
    %21 = vector.load %arg0[%c0, %c0_4, %c0_5] : memref<2x8x290xf32, #tpu.memory_space<vmem>>, vector<1x8x290xf32>
    %22 = vector.shape_cast %21 : vector<1x8x290xf32> to vector<8x290xf32>
    %23 = vector.extract_strided_slice %22 {offsets = [0, 0], sizes = [8, 256], strides = [1, 1]} : vector<8x290xf32> to vector<8x256xf32>
    %cst = arith.constant 0.000000e+00 : f32
    %24 = vector.broadcast %cst : f32 to vector<8x256xf32>
    %25 = arith.select %18, %23, %24 : vector<8x256xi1>, vector<8x256xf32>
    %26 = vector.extract_strided_slice %22 {offsets = [0, 1], sizes = [8, 256], strides = [1, 1]} : vector<8x290xf32> to vector<8x256xf32>
    %27 = vector.extract_strided_slice %22 {offsets = [0, 2], sizes = [8, 256], strides = [1, 1]} : vector<8x290xf32> to vector<8x256xf32>
    %cst_6 = arith.constant 0.000000e+00 : f32
    %28 = vector.broadcast %cst_6 : f32 to vector<8x256xf32>
    %29 = arith.select %20, %27, %28 : vector<8x256xi1>, vector<8x256xf32>
    %30 = vector.extract_strided_slice %22 {offsets = [0, 16], sizes = [8, 256], strides = [1, 1]} : vector<8x290xf32> to vector<8x256xf32>
    %cst_7 = arith.constant 0.000000e+00 : f32
    %31 = vector.broadcast %cst_7 : f32 to vector<8x256xf32>
    %32 = arith.select %18, %30, %31 : vector<8x256xi1>, vector<8x256xf32>
    %33 = vector.extract_strided_slice %22 {offsets = [0, 17], sizes = [8, 256], strides = [1, 1]} : vector<8x290xf32> to vector<8x256xf32>
    %34 = vector.extract_strided_slice %22 {offsets = [0, 18], sizes = [8, 256], strides = [1, 1]} : vector<8x290xf32> to vector<8x256xf32>
    %cst_8 = arith.constant 0.000000e+00 : f32
    %35 = vector.broadcast %cst_8 : f32 to vector<8x256xf32>
    %36 = arith.select %20, %34, %35 : vector<8x256xi1>, vector<8x256xf32>
    %37 = vector.extract_strided_slice %22 {offsets = [0, 32], sizes = [8, 256], strides = [1, 1]} : vector<8x290xf32> to vector<8x256xf32>
    %cst_9 = arith.constant 0.000000e+00 : f32
    %38 = vector.broadcast %cst_9 : f32 to vector<8x256xf32>
    %39 = arith.select %18, %37, %38 : vector<8x256xi1>, vector<8x256xf32>
    %40 = vector.extract_strided_slice %22 {offsets = [0, 33], sizes = [8, 256], strides = [1, 1]} : vector<8x290xf32> to vector<8x256xf32>
    %41 = vector.extract_strided_slice %22 {offsets = [0, 34], sizes = [8, 256], strides = [1, 1]} : vector<8x290xf32> to vector<8x256xf32>
    %cst_10 = arith.constant 0.000000e+00 : f32
    %42 = vector.broadcast %cst_10 : f32 to vector<8x256xf32>
    %43 = arith.select %20, %41, %42 : vector<8x256xi1>, vector<8x256xf32>
    %44 = tpu.concatenate %25, %26, %29, %32, %33, %36, %39, %40, %43 in 0 : vector<8x256xf32>, vector<8x256xf32>, vector<8x256xf32>, vector<8x256xf32>, vector<8x256xf32>, vector<8x256xf32>, vector<8x256xf32>, vector<8x256xf32>, vector<8x256xf32> -> vector<72x256xf32>
    %c0_11 = arith.constant 0 : index
    %c0_12 = arith.constant 0 : index
    %45 = vector.load %arg1[%c0_11, %c0_12] : memref<32x72xbf16, #tpu.memory_space<vmem>>, vector<32x72xbf16>
    %46 = arith.truncf %44 : vector<72x256xf32> to vector<72x256xbf16>
    %cst_13 = arith.constant dense<0.000000e+00> : vector<32x256xf32>
    %47 = tpu.matmul %45, %46, %cst_13 {dimension_numbers = #tpu.dot_dimension_numbers<[1], [0], [0], [1], [0, 0, 1, 1], [], []>} : vector<32x72xbf16>, vector<72x256xbf16>, vector<32x256xf32> -> vector<32x256xf32>
    %c0_14 = arith.constant 0 : index
    %c0_15 = arith.constant 0 : index
    %48 = vector.load %arg2[%c0_14, %c0_15] : memref<32x1xf32, #tpu.memory_space<vmem>>, vector<32x1xf32>
    %49 = vector.broadcast %48 : vector<32x1xf32> to vector<32x256xf32>
    %50 = arith.addf %47, %49 : vector<32x256xf32>
    %c0_16 = arith.constant 0 : index
    %c0_17 = arith.constant 0 : index
    %c0_18 = arith.constant 0 : index
    %51 = vector.load %arg3[%c0_16, %c0_17, %c0_18] : memref<2x32x256xf32, #tpu.memory_space<vmem>>, vector<1x32x256xf32>
    %52 = vector.shape_cast %51 : vector<1x32x256xf32> to vector<32x256xf32>
    %53 = vector.shape_cast %50 : vector<32x256xf32> to vector<1x32x256xf32>
    tpu.vector_store %arg3[%c0_16, %c0_17, %c0_18], %53 {strides = array<i32>} : memref<2x32x256xf32, #tpu.memory_space<vmem>>, vector<1x32x256xf32>,
    %c1 = arith.constant 1 : index
    %c0_19 = arith.constant 0 : index
    %c0_20 = arith.constant 0 : index
    %54 = vector.load %arg0[%c1, %c0_19, %c0_20] : memref<2x8x290xf32, #tpu.memory_space<vmem>>, vector<1x8x290xf32>
    %55 = vector.shape_cast %54 : vector<1x8x290xf32> to vector<8x290xf32>
    %56 = vector.extract_strided_slice %55 {offsets = [0, 0], sizes = [8, 256], strides = [1, 1]} : vector<8x290xf32> to vector<8x256xf32>
    %cst_21 = arith.constant 0.000000e+00 : f32
    %57 = vector.broadcast %cst_21 : f32 to vector<8x256xf32>
    %58 = arith.select %18, %56, %57 : vector<8x256xi1>, vector<8x256xf32>
    %59 = vector.extract_strided_slice %55 {offsets = [0, 1], sizes = [8, 256], strides = [1, 1]} : vector<8x290xf32> to vector<8x256xf32>
    %60 = vector.extract_strided_slice %55 {offsets = [0, 2], sizes = [8, 256], strides = [1, 1]} : vector<8x290xf32> to vector<8x256xf32>
    %cst_22 = arith.constant 0.000000e+00 : f32
    %61 = vector.broadcast %cst_22 : f32 to vector<8x256xf32>
    %62 = arith.select %20, %60, %61 : vector<8x256xi1>, vector<8x256xf32>
    %63 = vector.extract_strided_slice %55 {offsets = [0, 16], sizes = [8, 256], strides = [1, 1]} : vector<8x290xf32> to vector<8x256xf32>
    %cst_23 = arith.constant 0.000000e+00 : f32
    %64 = vector.broadcast %cst_23 : f32 to vector<8x256xf32>
    %65 = arith.select %18, %63, %64 : vector<8x256xi1>, vector<8x256xf32>
    %66 = vector.extract_strided_slice %55 {offsets = [0, 17], sizes = [8, 256], strides = [1, 1]} : vector<8x290xf32> to vector<8x256xf32>
    %67 = vector.extract_strided_slice %55 {offsets = [0, 18], sizes = [8, 256], strides = [1, 1]} : vector<8x290xf32> to vector<8x256xf32>
    %cst_24 = arith.constant 0.000000e+00 : f32
    %68 = vector.broadcast %cst_24 : f32 to vector<8x256xf32>
    %69 = arith.select %20, %67, %68 : vector<8x256xi1>, vector<8x256xf32>
    %70 = vector.extract_strided_slice %55 {offsets = [0, 32], sizes = [8, 256], strides = [1, 1]} : vector<8x290xf32> to vector<8x256xf32>
    %cst_25 = arith.constant 0.000000e+00 : f32
    %71 = vector.broadcast %cst_25 : f32 to vector<8x256xf32>
    %72 = arith.select %18, %70, %71 : vector<8x256xi1>, vector<8x256xf32>
    %73 = vector.extract_strided_slice %55 {offsets = [0, 33], sizes = [8, 256], strides = [1, 1]} : vector<8x290xf32> to vector<8x256xf32>
    %74 = vector.extract_strided_slice %55 {offsets = [0, 34], sizes = [8, 256], strides = [1, 1]} : vector<8x290xf32> to vector<8x256xf32>
    %cst_26 = arith.constant 0.000000e+00 : f32
    %75 = vector.broadcast %cst_26 : f32 to vector<8x256xf32>
    %76 = arith.select %20, %74, %75 : vector<8x256xi1>, vector<8x256xf32>
    %77 = tpu.concatenate %58, %59, %62, %65, %66, %69, %72, %73, %76 in 0 : vector<8x256xf32>, vector<8x256xf32>, vector<8x256xf32>, vector<8x256xf32>, vector<8x256xf32>, vector<8x256xf32>, vector<8x256xf32>, vector<8x256xf32>, vector<8x256xf32> -> vector<72x256xf32>
    %c0_27 = arith.constant 0 : index
    %c0_28 = arith.constant 0 : index
    %78 = vector.load %arg1[%c0_27, %c0_28] : memref<32x72xbf16, #tpu.memory_space<vmem>>, vector<32x72xbf16>
    %79 = arith.truncf %77 : vector<72x256xf32> to vector<72x256xbf16>
    %cst_29 = arith.constant dense<0.000000e+00> : vector<32x256xf32>
    %80 = tpu.matmul %78, %79, %cst_29 {dimension_numbers = #tpu.dot_dimension_numbers<[1], [0], [0], [1], [0, 0, 1, 1], [], []>} : vector<32x72xbf16>, vector<72x256xbf16>, vector<32x256xf32> -> vector<32x256xf32>
    %c0_30 = arith.constant 0 : index
    %c0_31 = arith.constant 0 : index
    %81 = vector.load %arg2[%c0_30, %c0_31] : memref<32x1xf32, #tpu.memory_space<vmem>>, vector<32x1xf32>
    %82 = vector.broadcast %81 : vector<32x1xf32> to vector<32x256xf32>
    %83 = arith.addf %80, %82 : vector<32x256xf32>
    %c1_32 = arith.constant 1 : index
    %c0_33 = arith.constant 0 : index
    %c0_34 = arith.constant 0 : index
    %84 = vector.load %arg3[%c1_32, %c0_33, %c0_34] : memref<2x32x256xf32, #tpu.memory_space<vmem>>, vector<1x32x256xf32>
    %85 = vector.shape_cast %84 : vector<1x32x256xf32> to vector<32x256xf32>
    %86 = vector.shape_cast %83 : vector<32x256xf32> to vector<1x32x256xf32>
    tpu.vector_store %arg3[%c1_32, %c0_33, %c0_34], %86 {strides = array<i32>} : memref<2x32x256xf32, #tpu.memory_space<vmem>>, vector<1x32x256xf32>,
    return
  }
}

</mosaic_0001>

<llo_original>
// kernel: conv2d_3x3_same.1
$region0: #{conv2d_3x3_same.1}
  #allocation0 [shape = 'u32[]', space=smem, size = 0x4, offset = 0x4, fixed_abs, tag = 'smem constant byte address 0x4 - core index']
  #allocation1 [shape = 'u32[72,128]{1,0:T(1,128)}', space=vmem, size = 0x9000, scoped, tag = 'internal scratch']
  %s0 = inlined_call_operand.vmem [shape: f32[2,8,290], index: 0, kind: input, shape index: {}]
  %s1 = inlined_call_operand.vmem [shape: bf16[32,72], index: 1, kind: input, shape index: {}]
  %s2 = inlined_call_operand.vmem [shape: f32[32,1], index: 2, kind: input, shape index: {}]
  %s3 = inlined_call_operand.vmem [shape: f32[2,32,256], index: 3, kind: output, shape index: {}]
  %s4 = sld [smem:[#allocation0]]
  $region22: #{conv2d_3x3_same.1} parent=0
    _
  %s6 = ssub.s32 1, %s4
  %s7 = scalar_select 0, %s6, %s4
  // Predicated region
  $region2: #{conv2d_3x3_same.1} parent=0 // pred_check
    _
  $region3: #{conv2d_3x3_same.1} parent=0 // pred_check_branch
    %9 = sbr.rel (0) target = $region5
  $region4: #{conv2d_3x3_same.1} parent=0 // pred_region
    _
  $region5: #{conv2d_3x3_same.1} parent=0 // pred_fallthru
    _
  // Predicated region
  $region6: #{conv2d_3x3_same.1} parent=0 // pred_check
    _
  $region7: #{conv2d_3x3_same.1} parent=0 // pred_check_branch
    %11 = sbr.rel (0) target = $region9
  $region8: #{conv2d_3x3_same.1} parent=0 // pred_region
    _
  $region9: #{conv2d_3x3_same.1} parent=0 // pred_fallthru
    _
  // Predicated region
  $region10: #{conv2d_3x3_same.1} parent=0 // pred_check
    _
  $region11: #{conv2d_3x3_same.1} parent=0 // pred_check_branch
    %13 = sbr.rel (0) target = $region13
  $region12: #{conv2d_3x3_same.1} parent=0 // pred_region
    _
  $region13: #{conv2d_3x3_same.1} parent=0 // pred_fallthru
    _
  %v15 = vlaneseq
  %v16 = vand.u32 %v15, 127
  %v17 = vadd.s32 %v16, 128
  %vm18 = vcmp.lt.s32.totalorder %v16, 0
  %v19 = vsub.s32 0, %v16
  %v20 = vsel %vm18, %v19, %v16
  %v21 = vshrl.u32 %v20, 4
  %v22 = vand.u32 %v20, 15
  %v23 = vsub.s32 0, %v22
  %v24 = vsel %vm18, %v23, %v22
  %vm25 = vcmp.lt.s32.totalorder %v17, 0
  %v26 = vsub.s32 0, %v17
  %v27 = vsel %vm25, %v26, %v17
  %v28 = vshrl.u32 %v27, 4
  %v29 = vand.u32 %v27, 15
  %v30 = vsub.s32 0, %v29
  %v31 = vsel %vm25, %v30, %v29
  %vm32 = vcmp.ne.s32.totalorder %v24, 0
  %vm33 = vcmp.ne.s32.totalorder %v31, 0
  %vm34 = vcmp.lt.s32.totalorder %v24, 0
  %vm35 = vcmp.lt.s32.totalorder %v31, 0
  %vm36 = vmand %vm34, %vm32
  %vm37 = vmand %vm35, %vm33
  %v38 = vadd.s32 %v24, 16
  %v39 = vadd.s32 %v31, 16
  %v40 = vsel %vm36, %v38, %v24
  %v41 = vsel %vm37, %v39, %v31
  %vm42 = vcmp.ne.s32.totalorder %v40, 0
  %vm43 = vcmp.ne.s32.totalorder %v41, 0
  %vm44 = vcmp.ne.s32.totalorder %v40, 15
  %vm45 = vcmp.ne.s32.totalorder %v41, 15
  %v46 = vld [vmem:[%s0] sm:$0xff]
  %v47 = vld [vmem:[%s0 + $0x8] sm:$0xff]
  %v48 = vld [vmem:[%s0 + $0x10] sm:$0xff]
  %v49 = vsel %vm42, %v46, 0.0
  %v50 = vsel %vm43, %v47, 0.0
  %54 = vrot.lane.b32.xlu0 %v46, 126
  %v55 = vpop.permute.xlu0 %54
  %56 = vrot.lane.b32.xlu0 %v47, 126
  %v57 = vpop.permute.xlu0 %56
  %58 = vrot.lane.b32.xlu0 %v48, 126
  %v59 = vpop.permute.xlu0 %58
  %vm60 = vcmask 1031168
  %v61 = vsel %vm60, %v55, %v57
  %v62 = vsel %vm60, %v57, %v59
  %v65 = vsel %vm44, %v61, 0.0
  %v66 = vsel %vm45, %v62, 0.0
  %67 = vrot.lane.b32.xlu0 %v46, 112
  %v68 = vpop.permute.xlu0 %67
  %69 = vrot.lane.b32.xlu0 %v47, 112
  %v70 = vpop.permute.xlu0 %69
  %71 = vrot.lane.b32.xlu0 %v48, 112
  %v72 = vpop.permute.xlu0 %71
  %vm73 = vcmask 916480
  %v74 = vsel %vm73, %v68, %v70
  %v75 = vsel %vm73, %v70, %v72
  %v78 = vsel %vm42, %v74, 0.0
  %v79 = vsel %vm43, %v75, 0.0
  %80 = vrot.lane.b32.xlu0 %v46, 110
  %v81 = vpop.permute.xlu0 %80
  %82 = vrot.lane.b32.xlu0 %v47, 110
  %v83 = vpop.permute.xlu0 %82
  %84 = vrot.lane.b32.xlu0 %v48, 110
  %v85 = vpop.permute.xlu0 %84
  %vm86 = vcmask 900096
  %v87 = vsel %vm86, %v81, %v83
  %v88 = vsel %vm86, %v83, %v85
  %v91 = vsel %vm44, %v87, 0.0
  %v92 = vsel %vm45, %v88, 0.0
  %93 = vrot.lane.b32.xlu0 %v46, 96
  %v94 = vpop.permute.xlu0 %93
  %95 = vrot.lane.b32.xlu0 %v47, 96
  %v96 = vpop.permute.xlu0 %95
  %97 = vrot.lane.b32.xlu0 %v48, 96
  %v98 = vpop.permute.xlu0 %97
  %vm99 = vcmask 785408
  %v100 = vsel %vm99, %v94, %v96
  %v101 = vsel %vm99, %v96, %v98
  %v104 = vsel %vm42, %v100, 0.0
  %v105 = vsel %vm43, %v101, 0.0
  %106 = vrot.lane.b32.xlu0 %v46, 94
  %v107 = vpop.permute.xlu0 %106
  %108 = vrot.lane.b32.xlu0 %v47, 94
  %v109 = vpop.permute.xlu0 %108
  %110 = vrot.lane.b32.xlu0 %v48, 94
  %v111 = vpop.permute.xlu0 %110
  %vm112 = vcmask 769024
  %v113 = vsel %vm112, %v107, %v109
  %v114 = vsel %vm112, %v109, %v111
  %v117 = vsel %vm44, %v113, 0.0
  %v118 = vsel %vm45, %v114, 0.0
  %119 = vrot.lane.b32.xlu0 %v46, 127
  %v120 = vpop.permute.xlu0 %119
  %121 = vrot.lane.b32.xlu0 %v47, 127
  %v122 = vpop.permute.xlu0 %121
  %123 = vrot.lane.b32.xlu0 %v48, 127
  %v124 = vpop.permute.xlu0 %123
  %vm125 = vcmask 1039360
  %v126 = vsel %vm125, %v120, %v122
  %v127 = vsel %vm125, %v122, %v124
  %130 = vrot.lane.b32.xlu0 %v46, 111
  %v131 = vpop.permute.xlu0 %130
  %132 = vrot.lane.b32.xlu0 %v47, 111
  %v133 = vpop.permute.xlu0 %132
  %134 = vrot.lane.b32.xlu0 %v48, 111
  %v135 = vpop.permute.xlu0 %134
  %vm136 = vcmask 908288
  %v137 = vsel %vm136, %v131, %v133
  %v138 = vsel %vm136, %v133, %v135
  %141 = vrot.lane.b32.xlu0 %v46, 95
  %v142 = vpop.permute.xlu0 %141
  %143 = vrot.lane.b32.xlu0 %v47, 95
  %v144 = vpop.permute.xlu0 %143
  %145 = vrot.lane.b32.xlu0 %v48, 95
  %v146 = vpop.permute.xlu0 %145
  %vm147 = vcmask 777216
  %v148 = vsel %vm147, %v142, %v144
  %v149 = vsel %vm147, %v144, %v146
  %v152 = vld [vmem:[%s1] sm:$0xf]
  %v153 = vld [vmem:[%s1 + $0x4] sm:$0xf]
  %v154 = vld [vmem:[%s1 + $0x8] sm:$0xf]
  %v155 = vld [vmem:[%s1 + $0xc] sm:$0xf]
  %v156 = vpack.c.bf16 %v126, %v49
  %v157 = vpack.c.bf16 %v127, %v50
  %v158 = vpack.c.bf16 %v78, %v65
  %v159 = vpack.c.bf16 %v79, %v66
  %v160 = vpack.c.bf16 %v91, %v137
  %v161 = vpack.c.bf16 %v92, %v138
  %v162 = vpack.c.bf16 %v148, %v104
  %v163 = vpack.c.bf16 %v149, %v105
  %v164 = vpack.c.bf16 %v117, %v117
  %v165 = vpack.c.bf16 %v118, %v118
  %v166 = vld [vmem:[%s2] sm:$0xff]
  %v167 = vld [vmem:[%s2 + $0x8] sm:$0xff]
  %v168 = vld [vmem:[%s2 + $0x10] sm:$0xff]
  %v169 = vld [vmem:[%s2 + $0x18] sm:$0xff]
  %171 = vset.pattern.permute.xlu0 0
  %172 = vperm.xlu0 %171, %v166
  %v173 = vpop.permute.xlu0 %172
  %176 = vset.pattern.permute.xlu0 0
  %177 = vperm.xlu0 %176, %v167
  %v178 = vpop.permute.xlu0 %177
  %181 = vset.pattern.permute.xlu0 0
  %182 = vperm.xlu0 %181, %v168
  %v183 = vpop.permute.xlu0 %182
  %186 = vset.pattern.permute.xlu0 0
  %187 = vperm.xlu0 %186, %v169
  %v188 = vpop.permute.xlu0 %187
  %v194 = vunpack.c.l.b16 %v152
  %v195 = vunpack.c.l.b16 %v153
  %v196 = vunpack.c.l.b16 %v154
  %v197 = vunpack.c.l.b16 %v155
  %v198 = vpack.c.b16 %v195, %v194
  %v199 = vpack.c.b16 %v197, %v196
  %vm200 = vcmask 588800
  %v202 = vsel %vm200, %v198, 0
  %v205 = vsel %vm200, %v199, 0
  %vm207 = vcmask 1043456
  %v209 = vsel %vm207, %v164, 0
  %v212 = vsel %vm207, %v165, 0
  %214 = vmatpush.bf16.msra.mxu0 0
  %215 = vmatpush.bf16.msra.mxu0 0
  %216 = vmatpush.bf16.msra.mxu0 0
  %217 = vmatpush.bf16.msra.mxu0 %v209
  %218 = vmatpush.bf16.msra.mxu0 %v162
  %219 = vmatpush.bf16.msra.mxu0 %v160
  %220 = vmatpush.bf16.msra.mxu0 %v158
  %221 = vmatpush.bf16.msra.mxu0 %v156
  %222 = vmatmul.bf16.gmra.mxu0 %v202
  %v223 = vpop.f32.mrf.mxu0
  %v224 = vadd.f32 %v173, %v223
  %v225 = vpop.f32.mrf.mxu0
  %v226 = vadd.f32 %v178, %v225
  %227 = vmatmul.bf16.gmra.mxu0 %v205
  %v228 = vpop.f32.mrf.mxu0
  %v229 = vadd.f32 %v183, %v228
  %v230 = vpop.f32.mrf.mxu0
  %v231 = vadd.f32 %v188, %v230
  %232 = vdwg.mxu0
  %233 = vmatpush.bf16.msra.mxu0 0
  %234 = vmatpush.bf16.msra.mxu0 0
  %235 = vmatpush.bf16.msra.mxu0 0
  %236 = vmatpush.bf16.msra.mxu0 %v212
  %237 = vmatpush.bf16.msra.mxu0 %v163
  %238 = vmatpush.bf16.msra.mxu0 %v161
  %239 = vmatpush.bf16.msra.mxu0 %v159
  %240 = vmatpush.bf16.msra.mxu0 %v157
  %241 = vmatmul.bf16.gmra.mxu0 %v202
  %v242 = vpop.f32.mrf.mxu0
  %v243 = vadd.f32 %v173, %v242
  %v244 = vpop.f32.mrf.mxu0
  %v245 = vadd.f32 %v178, %v244
  %246 = vmatmul.bf16.gmra.mxu0 %v205
  %v247 = vpop.f32.mrf.mxu0
  %v248 = vadd.f32 %v183, %v247
  %v249 = vpop.f32.mrf.mxu0
  %v250 = vadd.f32 %v188, %v249
  %251 = vdwg.mxu0
  %252 = vst [vmem:[%s3] sm:$0xff] %v224
  %253 = vst [vmem:[%s3 + $0x8] sm:$0xff] %v243
  %254 = vst [vmem:[%s3 + $0x10] sm:$0xff] %v226
  %255 = vst [vmem:[%s3 + $0x18] sm:$0xff] %v245
  %256 = vst [vmem:[%s3 + $0x20] sm:$0xff] %v229
  %257 = vst [vmem:[%s3 + $0x28] sm:$0xff] %v248
  %258 = vst [vmem:[%s3 + $0x30] sm:$0xff] %v231
  %259 = vst [vmem:[%s3 + $0x38] sm:$0xff] %v250
  %s260 = scalar_lea.vmem %s0, 24
  %v261 = vld [vmem:[%s260] sm:$0xff]
  %v262 = vld [vmem:[%s260 + $0x8] sm:$0xff]
  %v263 = vld [vmem:[%s260 + $0x10] sm:$0xff]
  %v264 = vsel %vm42, %v261, 0.0
  %v265 = vsel %vm43, %v262, 0.0
  %269 = vrot.lane.b32.xlu0 %v261, 126
  %v270 = vpop.permute.xlu0 %269
  %271 = vrot.lane.b32.xlu0 %v262, 126
  %v272 = vpop.permute.xlu0 %271
  %273 = vrot.lane.b32.xlu0 %v263, 126
  %v274 = vpop.permute.xlu0 %273
  %v275 = vsel %vm60, %v270, %v272
  %v276 = vsel %vm60, %v272, %v274
  %v279 = vsel %vm44, %v275, 0.0
  %v280 = vsel %vm45, %v276, 0.0
  %281 = vrot.lane.b32.xlu0 %v261, 112
  %v282 = vpop.permute.xlu0 %281
  %283 = vrot.lane.b32.xlu0 %v262, 112
  %v284 = vpop.permute.xlu0 %283
  %285 = vrot.lane.b32.xlu0 %v263, 112
  %v286 = vpop.permute.xlu0 %285
  %v287 = vsel %vm73, %v282, %v284
  %v288 = vsel %vm73, %v284, %v286
  %v291 = vsel %vm42, %v287, 0.0
  %v292 = vsel %vm43, %v288, 0.0
  %293 = vrot.lane.b32.xlu0 %v261, 110
  %v294 = vpop.permute.xlu0 %293
  %295 = vrot.lane.b32.xlu0 %v262, 110
  %v296 = vpop.permute.xlu0 %295
  %297 = vrot.lane.b32.xlu0 %v263, 110
  %v298 = vpop.permute.xlu0 %297
  %v299 = vsel %vm86, %v294, %v296
  %v300 = vsel %vm86, %v296, %v298
  %v303 = vsel %vm44, %v299, 0.0
  %v304 = vsel %vm45, %v300, 0.0
  %305 = vrot.lane.b32.xlu0 %v261, 96
  %v306 = vpop.permute.xlu0 %305
  %307 = vrot.lane.b32.xlu0 %v262, 96
  %v308 = vpop.permute.xlu0 %307
  %309 = vrot.lane.b32.xlu0 %v263, 96
  %v310 = vpop.permute.xlu0 %309
  %v311 = vsel %vm99, %v306, %v308
  %v312 = vsel %vm99, %v308, %v310
  %v315 = vsel %vm42, %v311, 0.0
  %v316 = vsel %vm43, %v312, 0.0
  %317 = vrot.lane.b32.xlu0 %v261, 94
  %v318 = vpop.permute.xlu0 %317
  %319 = vrot.lane.b32.xlu0 %v262, 94
  %v320 = vpop.permute.xlu0 %319
  %321 = vrot.lane.b32.xlu0 %v263, 94
  %v322 = vpop.permute.xlu0 %321
  %v323 = vsel %vm112, %v318, %v320
  %v324 = vsel %vm112, %v320, %v322
  %v327 = vsel %vm44, %v323, 0.0
  %v328 = vsel %vm45, %v324, 0.0
  %329 = vrot.lane.b32.xlu0 %v261, 127
  %v330 = vpop.permute.xlu0 %329
  %331 = vrot.lane.b32.xlu0 %v262, 127
  %v332 = vpop.permute.xlu0 %331
  %333 = vrot.lane.b32.xlu0 %v263, 127
  %v334 = vpop.permute.xlu0 %333
  %v335 = vsel %vm125, %v330, %v332
  %v336 = vsel %vm125, %v332, %v334
  %339 = vrot.lane.b32.xlu0 %v261, 111
  %v340 = vpop.permute.xlu0 %339
  %341 = vrot.lane.b32.xlu0 %v262, 111
  %v342 = vpop.permute.xlu0 %341
  %343 = vrot.lane.b32.xlu0 %v263, 111
  %v344 = vpop.permute.xlu0 %343
  %v345 = vsel %vm136, %v340, %v342
  %v346 = vsel %vm136, %v342, %v344
  %349 = vrot.lane.b32.xlu0 %v261, 95
  %v350 = vpop.permute.xlu0 %349
  %351 = vrot.lane.b32.xlu0 %v262, 95
  %v352 = vpop.permute.xlu0 %351
  %353 = vrot.lane.b32.xlu0 %v263, 95
  %v354 = vpop.permute.xlu0 %353
  %v355 = vsel %vm147, %v350, %v352
  %v356 = vsel %vm147, %v352, %v354
  %v359 = vld [vmem:[%s1] sm:$0xf]
  %v360 = vld [vmem:[%s1 + $0x4] sm:$0xf]
  %v361 = vld [vmem:[%s1 + $0x8] sm:$0xf]
  %v362 = vld [vmem:[%s1 + $0xc] sm:$0xf]
  %v363 = vpack.c.bf16 %v335, %v264
  %v364 = vpack.c.bf16 %v336, %v265
  %v365 = vpack.c.bf16 %v291, %v279
  %v366 = vpack.c.bf16 %v292, %v280
  %v367 = vpack.c.bf16 %v303, %v345
  %v368 = vpack.c.bf16 %v304, %v346
  %v369 = vpack.c.bf16 %v355, %v315
  %v370 = vpack.c.bf16 %v356, %v316
  %v371 = vpack.c.bf16 %v327, %v327
  %v372 = vpack.c.bf16 %v328, %v328
  %v373 = vld [vmem:[%s2] sm:$0xff]
  %v374 = vld [vmem:[%s2 + $0x8] sm:$0xff]
  %v375 = vld [vmem:[%s2 + $0x10] sm:$0xff]
  %v376 = vld [vmem:[%s2 + $0x18] sm:$0xff]
  %378 = vset.pattern.permute.xlu0 0
  %379 = vperm.xlu0 %378, %v373
  %v380 = vpop.permute.xlu0 %379
  %383 = vset.pattern.permute.xlu0 0
  %384 = vperm.xlu0 %383, %v374
  %v385 = vpop.permute.xlu0 %384
  %388 = vset.pattern.permute.xlu0 0
  %389 = vperm.xlu0 %388, %v375
  %v390 = vpop.permute.xlu0 %389
  %393 = vset.pattern.permute.xlu0 0
  %394 = vperm.xlu0 %393, %v376
  %v395 = vpop.permute.xlu0 %394
  %v401 = vunpack.c.l.b16 %v359
  %v402 = vunpack.c.l.b16 %v360
  %v403 = vunpack.c.l.b16 %v361
  %v404 = vunpack.c.l.b16 %v362
  %v405 = vpack.c.b16 %v402, %v401
  %v406 = vpack.c.b16 %v404, %v403
  %v408 = vsel %vm200, %v405, 0
  %v411 = vsel %vm200, %v406, 0
  %v414 = vsel %vm207, %v371, 0
  %v417 = vsel %vm207, %v372, 0
  %419 = vmatpush.bf16.msra.mxu0 0
  %420 = vmatpush.bf16.msra.mxu0 0
  %421 = vmatpush.bf16.msra.mxu0 0
  %422 = vmatpush.bf16.msra.mxu0 %v414
  %423 = vmatpush.bf16.msra.mxu0 %v369
  %424 = vmatpush.bf16.msra.mxu0 %v367
  %425 = vmatpush.bf16.msra.mxu0 %v365
  %426 = vmatpush.bf16.msra.mxu0 %v363
  %427 = vmatmul.bf16.gmra.mxu0 %v408
  %v428 = vpop.f32.mrf.mxu0
  %v429 = vadd.f32 %v380, %v428
  %v430 = vpop.f32.mrf.mxu0
  %v431 = vadd.f32 %v385, %v430
  %432 = vmatmul.bf16.gmra.mxu0 %v411
  %v433 = vpop.f32.mrf.mxu0
  %v434 = vadd.f32 %v390, %v433
  %v435 = vpop.f32.mrf.mxu0
  %v436 = vadd.f32 %v395, %v435
  %437 = vdwg.mxu0
  %438 = vmatpush.bf16.msra.mxu0 0
  %439 = vmatpush.bf16.msra.mxu0 0
  %440 = vmatpush.bf16.msra.mxu0 0
  %441 = vmatpush.bf16.msra.mxu0 %v417
  %442 = vmatpush.bf16.msra.mxu0 %v370
  %443 = vmatpush.bf16.msra.mxu0 %v368
  %444 = vmatpush.bf16.msra.mxu0 %v366
  %445 = vmatpush.bf16.msra.mxu0 %v364
  %446 = vmatmul.bf16.gmra.mxu0 %v408
  %v447 = vpop.f32.mrf.mxu0
  %v448 = vadd.f32 %v380, %v447
  %v449 = vpop.f32.mrf.mxu0
  %v450 = vadd.f32 %v385, %v449
  %451 = vmatmul.bf16.gmra.mxu0 %v411
  %v452 = vpop.f32.mrf.mxu0
  %v453 = vadd.f32 %v390, %v452
  %v454 = vpop.f32.mrf.mxu0
  %v455 = vadd.f32 %v395, %v454
  %456 = vdwg.mxu0
  %s457 = scalar_lea.vmem %s3, 64
  %458 = vst [vmem:[%s457] sm:$0xff] %v429
  %459 = vst [vmem:[%s457 + $0x8] sm:$0xff] %v448
  %460 = vst [vmem:[%s457 + $0x10] sm:$0xff] %v431
  %461 = vst [vmem:[%s457 + $0x18] sm:$0xff] %v450
  %462 = vst [vmem:[%s457 + $0x20] sm:$0xff] %v434
  %463 = vst [vmem:[%s457 + $0x28] sm:$0xff] %v453
  %464 = vst [vmem:[%s457 + $0x30] sm:$0xff] %v436
  %465 = vst [vmem:[%s457 + $0x38] sm:$0xff] %v455
  // Predicated region
  $region14: #{conv2d_3x3_same.1} parent=0 // pred_check
    _
  $region15: #{conv2d_3x3_same.1} parent=0 // pred_check_branch
    %467 = sbr.rel (0) target = $region17
  $region16: #{conv2d_3x3_same.1} parent=0 // pred_region
    _
  $region17: #{conv2d_3x3_same.1} parent=0 // pred_fallthru
    _
  // Predicated region
  $region18: #{conv2d_3x3_same.1} parent=0 // pred_check
    _
  $region19: #{conv2d_3x3_same.1} parent=0 // pred_check_branch
    %469 = sbr.rel (0) target = $region21
  $region20: #{conv2d_3x3_same.1} parent=0 // pred_region
    _
  $region21: #{conv2d_3x3_same.1} parent=0 // pred_fallthru
    _

</llo_original>
